<compile_context>
chip_gen: v7x
topology: tpu7x:2x2x1
jax: 0.10.0
libtpu: 0.0.40
codegen_flags: <defaults>
</compile_context>

<pallas_src>
import functools

import jax
import jax.numpy as jnp
from jax.experimental import pallas as pl
from jax.experimental.pallas import tpu as pltpu


def _gemma_mlp_kernel(x_ref, wg_ref, wu_ref, wd_ref, o_ref, h_ref, acc_ref,
                      *, ti: int, num_i: int):
    """One (row-tile, phase, intermediate-slab) grid step.

    x_ref : [tm, H]          f32   row tile (resident across phase/slab axes)
    wg_ref: [H, ti]          bf16  gate_proj column slab (streamed in phase 0)
    wu_ref: [I, ti]          bf16  up_proj column slab   (streamed in phase 1)
    wd_ref: [ti, H]          bf16  down_proj row slab    (streamed in phase 1)
    o_ref : [tm, H]          f32   output row tile
    h_ref : [num_i, tm, ti]  bf16  scratch: gelu(gate_proj(x)) per slab
    acc_ref:[tm, H]          f32   scratch: down_proj accumulator
    """
    phase = pl.program_id(1)
    i = pl.program_id(2)

    @pl.when(phase == 0)
    def _gate_phase():
        g = jnp.dot(x_ref[...].astype(jnp.bfloat16), wg_ref[...],
                    preferred_element_type=jnp.float32)
        # gelu in f32 (tanh approx == F.gelu(..., approximate='tanh')); store bf16
        # so the phase-1 MXU reads it with no further casts.
        h_ref[i] = jax.nn.gelu(g, approximate=True).astype(jnp.bfloat16)

    @pl.when(phase == 1)
    def _up_down_phase():
        @pl.when(i == 0)
        def _init():
            acc_ref[...] = jnp.zeros_like(acc_ref)

        # j[:, slab_i] = (full h) @ Wu[:, slab_i]; the full-I contraction is
        # accumulated slab-by-slab with static slices (f32 accumulation on MXU).
        j = jnp.dot(h_ref[0], wu_ref[pl.ds(0, ti), :],
                    preferred_element_type=jnp.float32)
        for k in range(1, num_i):
            j = j + jnp.dot(h_ref[k], wu_ref[pl.ds(k * ti, ti), :],
                            preferred_element_type=jnp.float32)

        # elementwise gating in f32, then partial down_proj into the accumulator
        z = j * h_ref[i].astype(jnp.float32)
        acc_ref[...] += jnp.dot(z.astype(jnp.bfloat16), wd_ref[...],
                                preferred_element_type=jnp.float32)

        @pl.when(i == pl.num_programs(2) - 1)
        def _finalize():
            o_ref[...] = acc_ref[...].astype(o_ref.dtype)


def prepare_weights(w_gate, w_up, w_down, compute_dtype=jnp.bfloat16):
    """One-time (init-time) conversion from PyTorch nn.Linear layout
    (out_features, in_features) f32 to kernel layout (in, out) bf16, so the
    per-call forward performs no transpose / cast of the weights."""
    return (jnp.asarray(w_gate.T, dtype=compute_dtype),
            jnp.asarray(w_up.T, dtype=compute_dtype),
            jnp.asarray(w_down.T, dtype=compute_dtype))


def gemma_mlp(x, wg_t, wu_t, wd_t, *, tm=None, ti=None):
    """x: [B, S, H] f32.  wg_t/wu_t: [H, I] bf16, wd_t: [I, H] bf16 (from prepare_weights)."""
    B, S, H = x.shape
    Hw, I = wg_t.shape
    assert Hw == H
    # The reference forward applies up_proj to gelu(gate_proj(x)) and gates by the
    # same tensor, which only type-checks when hidden_size == intermediate_size.
    assert H == I, "reference GemmaMLP.forward requires hidden_size == intermediate_size"
    assert wu_t.shape == (H, I) and wd_t.shape == (I, H)

    M = B * S
    if tm is None:
        tm = min(256, M)
    if ti is None:
        ti = min(512, I)
    assert M % tm == 0 and tm % 8 == 0
    assert H % 128 == 0 and I % ti == 0 and ti % 128 == 0

    num_m = M // tm
    num_i = I // ti

    x2d = x.reshape(M, H)
    kernel = functools.partial(_gemma_mlp_kernel, ti=ti, num_i=num_i)

    out2d = pl.pallas_call(
        kernel,
        out_shape=jax.ShapeDtypeStruct((M, H), x.dtype),
        grid_spec=pltpu.PrefetchScalarGridSpec(
            num_scalar_prefetch=0,
            grid=(num_m, 2, num_i),
            in_specs=[
                # x row tile: resident across the phase / slab axes
                pl.BlockSpec((tm, H), lambda m, p, i: (m, 0)),
                # gate weight column slab: streamed in phase 0, parked at slab 0 in phase 1
                pl.BlockSpec((H, ti), lambda m, p, i: (0, i * (1 - p))),
                # up weight column slab: streamed in phase 1, parked at slab 0 in phase 0
                pl.BlockSpec((I, ti), lambda m, p, i: (0, i * p)),
                # down weight row slab: streamed in phase 1, parked at slab 0 in phase 0
                pl.BlockSpec((ti, H), lambda m, p, i: (i * p, 0)),
            ],
            out_specs=pl.BlockSpec((tm, H), lambda m, p, i: (m, 0)),
            scratch_shapes=[
                pltpu.VMEM((num_i, tm, ti), jnp.bfloat16),  # h = gelu(gate_proj(x))
                pltpu.VMEM((tm, H), jnp.float32),           # down_proj f32 accumulator
            ],
        ),
        compiler_params=pltpu.CompilerParams(
            # M axis shards across TensorCores (megacore); phase/slab are sequential.
            dimension_semantics=("parallel", "arbitrary", "arbitrary"),
            # Above the 16/32 MiB scoped defaults, below v7x's 64 MiB physical VMEM.
            vmem_limit_bytes=48 * 1024 * 1024,
        ),
        cost_estimate=pl.CostEstimate(
            flops=2 * M * H * I + 2 * M * I * I + 2 * M * I * H,
            transcendentals=M * I,
            bytes_accessed=(2 * M * H * x.dtype.itemsize
                            + num_m * (wg_t.size + wu_t.size + wd_t.size)
                            * jnp.dtype(wg_t.dtype).itemsize),
        ),
    )(x2d, wg_t, wu_t, wd_t)

    return out2d.reshape(B, S, H)


def gemma_mlp_ref(x, w_gate, w_up, w_down):
    """Pure-JAX f32 reference mirroring the PyTorch forward exactly."""
    g = jnp.einsum("bsh,ih->bsi", x, w_gate)
    h = jax.nn.gelu(g, approximate=True)
    j = jnp.einsum("bsi,oi->bso", h, w_up)
    z = j * h
    return jnp.einsum("bsi,hi->bsh", z, w_down)


if __name__ == "__main__":
    # Small, lane-aligned example config (reference forward requires H == I).
    batch, seq = 2, 64
    hidden_size = 256
    intermediate_size = 256

    key = jax.random.PRNGKey(0)
    kx, kg, ku, kd = jax.random.split(key, 4)

    x = jax.random.normal(kx, (batch, seq, hidden_size), dtype=jnp.float32)
    # PyTorch nn.Linear weight layout: (out_features, in_features)
    scale = 1.0 / (hidden_size ** 0.5)
    w_gate = jax.random.uniform(kg, (intermediate_size, hidden_size),
                                jnp.float32, -scale, scale)
    w_up = jax.random.uniform(ku, (intermediate_size, hidden_size),
                              jnp.float32, -scale, scale)
    w_down = jax.random.uniform(kd, (hidden_size, intermediate_size),
                                jnp.float32, -scale, scale)

    # One-time weight prep (transpose + bf16), NOT part of the per-call forward.
    wg_t, wu_t, wd_t = prepare_weights(w_gate, w_up, w_down)

    out = gemma_mlp(x, wg_t, wu_t, wd_t, tm=64, ti=128)   # grid = (2, 2, 2)
    out = jax.block_until_ready(out)

    ref = gemma_mlp_ref(x, w_gate, w_up, w_down)
    assert out.shape == (batch, seq, hidden_size)
    # bf16 MXU operands vs f32 reference -> looser tolerance than a pure-f32 kernel.
    max_err = float(jnp.max(jnp.abs(out - ref)))
    assert jnp.allclose(out, ref, atol=2e-2, rtol=2e-2), f"mismatch vs reference (max abs err {max_err})"

    print("KERNEL_OK")
</pallas_src>

<mosaic_0001>
module attributes {stable_mosaic.version = 11 : i64} {
  func.func @_gemma_mlp_kernel(%arg0: i32, %arg1: i32, %arg2: i32, %arg3: memref<64x256xf32, #tpu.memory_space<vmem>>, %arg4: memref<256x128xbf16, #tpu.memory_space<vmem>>, %arg5: memref<256x128xbf16, #tpu.memory_space<vmem>>, %arg6: memref<128x256xbf16, #tpu.memory_space<vmem>>, %arg7: memref<64x256xf32, #tpu.memory_space<vmem>>, %arg8: memref<2x64x128xbf16, #tpu.memory_space<vmem>>, %arg9: memref<64x256xf32, #tpu.memory_space<vmem>>) attributes {dimension_semantics = [#tpu.dimension_semantics<parallel>, #tpu.dimension_semantics<arbitrary>, #tpu.dimension_semantics<arbitrary>], iteration_bounds = array<i64: 2, 2, 2>, scalar_prefetch = 0 : i64, scratch_operands = 2 : i64, tpu.core_type = #tpu.core_type<tc>, window_params = [{transform_indices = @transform_0, window_bounds = array<i64: 64, 256>}, {transform_indices = @transform_1, window_bounds = array<i64: 256, 128>}, {transform_indices = @transform_2, window_bounds = array<i64: 256, 128>}, {transform_indices = @transform_3, window_bounds = array<i64: 128, 256>}, {transform_indices = @transform_4, window_bounds = array<i64: 64, 256>}]} {
    %c0_i32 = arith.constant 0 : i32
    %0 = arith.cmpi eq, %arg1, %c0_i32 : i32
    %1 = arith.extui %0 : i1 to i32
    %c0_i32_0 = arith.constant 0 : i32
    %2 = arith.cmpi ne, %1, %c0_i32_0 : i32
    scf.if %2 {
      %c0 = arith.constant 0 : index
      %c0_2 = arith.constant 0 : index
      %6 = vector.load %arg3[%c0, %c0_2] : memref<64x256xf32, #tpu.memory_space<vmem>>, vector<64x256xf32>
      %7 = arith.truncf %6 : vector<64x256xf32> to vector<64x256xbf16>
      %c0_3 = arith.constant 0 : index
      %c0_4 = arith.constant 0 : index
      %8 = vector.load %arg4[%c0_3, %c0_4] : memref<256x128xbf16, #tpu.memory_space<vmem>>, vector<256x128xbf16>
      %cst = arith.constant dense<0.000000e+00> : vector<64x128xf32>
      %9 = tpu.matmul %7, %8, %cst {dimension_numbers = #tpu.dot_dimension_numbers<[1], [0], [0], [1], [0, 0, 1, 1], [], []>} : vector<64x256xbf16>, vector<256x128xbf16>, vector<64x128xf32> -> vector<64x128xf32>
      %10 = arith.mulf %9, %9 : vector<64x128xf32>
      %11 = arith.mulf %9, %10 : vector<64x128xf32>
      %cst_5 = arith.constant 4.471500e-02 : f32
      %12 = vector.broadcast %cst_5 : f32 to vector<64x128xf32>
      %13 = arith.mulf %12, %11 : vector<64x128xf32>
      %14 = arith.addf %9, %13 : vector<64x128xf32>
      %cst_6 = arith.constant 0.797884583 : f32
      %15 = vector.broadcast %cst_6 : f32 to vector<64x128xf32>
      %16 = arith.mulf %15, %14 : vector<64x128xf32>
      %17 = math.tanh %16 : vector<64x128xf32>
      %cst_7 = arith.constant 1.000000e+00 : f32
      %18 = vector.broadcast %cst_7 : f32 to vector<64x128xf32>
      %19 = arith.addf %18, %17 : vector<64x128xf32>
      %cst_8 = arith.constant 5.000000e-01 : f32
      %20 = vector.broadcast %cst_8 : f32 to vector<64x128xf32>
      %21 = arith.mulf %20, %19 : vector<64x128xf32>
      %22 = arith.mulf %9, %21 : vector<64x128xf32>
      %23 = arith.truncf %22 : vector<64x128xf32> to vector<64x128xbf16>
      %24 = arith.index_cast %arg2 : i32 to index
      %c0_9 = arith.constant 0 : index
      %c0_10 = arith.constant 0 : index
      %25 = vector.load %arg8[%24, %c0_9, %c0_10] : memref<2x64x128xbf16, #tpu.memory_space<vmem>>, vector<1x64x128xbf16>
      %26 = vector.shape_cast %25 : vector<1x64x128xbf16> to vector<64x128xbf16>
      %27 = vector.shape_cast %23 : vector<64x128xbf16> to vector<1x64x128xbf16>
      tpu.vector_store %arg8[%24, %c0_9, %c0_10], %27 {strides = array<i32>} : memref<2x64x128xbf16, #tpu.memory_space<vmem>>, vector<1x64x128xbf16>,
    } else {
    }
    %c1_i32 = arith.constant 1 : i32
    %3 = arith.cmpi eq, %arg1, %c1_i32 : i32
    %4 = arith.extui %3 : i1 to i32
    %c0_i32_1 = arith.constant 0 : i32
    %5 = arith.cmpi ne, %4, %c0_i32_1 : i32
    scf.if %5 {
      %c0_i32_2 = arith.constant 0 : i32
      %6 = arith.cmpi eq, %arg2, %c0_i32_2 : i32
      %7 = arith.extui %6 : i1 to i32
      %c0_i32_3 = arith.constant 0 : i32
      %8 = arith.cmpi ne, %7, %c0_i32_3 : i32
      scf.if %8 {
        %cst_23 = arith.constant 0.000000e+00 : f32
        %32 = vector.broadcast %cst_23 : f32 to vector<64x256xf32>
        %c0_24 = arith.constant 0 : index
        %c0_25 = arith.constant 0 : index
        %33 = vector.load %arg9[%c0_24, %c0_25] : memref<64x256xf32, #tpu.memory_space<vmem>>, vector<64x256xf32>
        tpu.vector_store %arg9[%c0_24, %c0_25], %32 {strides = array<i32>} : memref<64x256xf32, #tpu.memory_space<vmem>>, vector<64x256xf32>,
      } else {
      }
      %c0 = arith.constant 0 : index
      %c0_4 = arith.constant 0 : index
      %c0_5 = arith.constant 0 : index
      %9 = vector.load %arg8[%c0, %c0_4, %c0_5] : memref<2x64x128xbf16, #tpu.memory_space<vmem>>, vector<1x64x128xbf16>
      %10 = vector.shape_cast %9 : vector<1x64x128xbf16> to vector<64x128xbf16>
      %c0_6 = arith.constant 0 : index
      %c0_7 = arith.constant 0 : index
      %11 = vector.load %arg5[%c0_6, %c0_7] : memref<256x128xbf16, #tpu.memory_space<vmem>>, vector<128x128xbf16>
      %cst = arith.constant dense<0.000000e+00> : vector<64x128xf32>
      %12 = tpu.matmul %10, %11, %cst {dimension_numbers = #tpu.dot_dimension_numbers<[1], [0], [0], [1], [0, 0, 1, 1], [], []>} : vector<64x128xbf16>, vector<128x128xbf16>, vector<64x128xf32> -> vector<64x128xf32>
      %c1 = arith.constant 1 : index
      %c0_8 = arith.constant 0 : index
      %c0_9 = arith.constant 0 : index
      %13 = vector.load %arg8[%c1, %c0_8, %c0_9] : memref<2x64x128xbf16, #tpu.memory_space<vmem>>, vector<1x64x128xbf16>
      %14 = vector.shape_cast %13 : vector<1x64x128xbf16> to vector<64x128xbf16>
      %c128 = arith.constant 128 : index
      %c0_10 = arith.constant 0 : index
      %15 = vector.load %arg5[%c128, %c0_10] : memref<256x128xbf16, #tpu.memory_space<vmem>>, vector<128x128xbf16>
      %cst_11 = arith.constant dense<0.000000e+00> : vector<64x128xf32>
      %16 = tpu.matmul %14, %15, %cst_11 {dimension_numbers = #tpu.dot_dimension_numbers<[1], [0], [0], [1], [0, 0, 1, 1], [], []>} : vector<64x128xbf16>, vector<128x128xbf16>, vector<64x128xf32> -> vector<64x128xf32>
      %17 = arith.addf %12, %16 : vector<64x128xf32>
      %18 = arith.index_cast %arg2 : i32 to index
      %c0_12 = arith.constant 0 : index
      %c0_13 = arith.constant 0 : index
      %19 = vector.load %arg8[%18, %c0_12, %c0_13] : memref<2x64x128xbf16, #tpu.memory_space<vmem>>, vector<1x64x128xbf16>
      %20 = vector.shape_cast %19 : vector<1x64x128xbf16> to vector<64x128xbf16>
      %21 = arith.extf %20 : vector<64x128xbf16> to vector<64x128xf32>
      %22 = arith.mulf %17, %21 : vector<64x128xf32>
      %c0_14 = arith.constant 0 : index
      %c0_15 = arith.constant 0 : index
      %23 = vector.load %arg9[%c0_14, %c0_15] : memref<64x256xf32, #tpu.memory_space<vmem>>, vector<64x256xf32>
      %24 = arith.truncf %22 : vector<64x128xf32> to vector<64x128xbf16>
      %c0_16 = arith.constant 0 : index
      %c0_17 = arith.constant 0 : index
      %25 = vector.load %arg6[%c0_16, %c0_17] : memref<128x256xbf16, #tpu.memory_space<vmem>>, vector<128x256xbf16>
      %cst_18 = arith.constant dense<0.000000e+00> : vector<64x256xf32>
      %26 = tpu.matmul %24, %25, %cst_18 {dimension_numbers = #tpu.dot_dimension_numbers<[1], [0], [0], [1], [0, 0, 1, 1], [], []>} : vector<64x128xbf16>, vector<128x256xbf16>, vector<64x256xf32> -> vector<64x256xf32>
      %27 = arith.addf %23, %26 : vector<64x256xf32>
      %c0_19 = arith.constant 0 : index
      %c0_20 = arith.constant 0 : index
      %28 = vector.load %arg9[%c0_19, %c0_20] : memref<64x256xf32, #tpu.memory_space<vmem>>, vector<64x256xf32>
      tpu.vector_store %arg9[%c0_19, %c0_20], %27 {strides = array<i32>} : memref<64x256xf32, #tpu.memory_space<vmem>>, vector<64x256xf32>,
      %c1_i32_21 = arith.constant 1 : i32
      %29 = arith.cmpi eq, %arg2, %c1_i32_21 : i32
      %30 = arith.extui %29 : i1 to i32
      %c0_i32_22 = arith.constant 0 : i32
      %31 = arith.cmpi ne, %30, %c0_i32_22 : i32
      scf.if %31 {
        %c0_23 = arith.constant 0 : index
        %c0_24 = arith.constant 0 : index
        %32 = vector.load %arg9[%c0_23, %c0_24] : memref<64x256xf32, #tpu.memory_space<vmem>>, vector<64x256xf32>
        %c0_25 = arith.constant 0 : index
        %c0_26 = arith.constant 0 : index
        %33 = vector.load %arg7[%c0_25, %c0_26] : memref<64x256xf32, #tpu.memory_space<vmem>>, vector<64x256xf32>
        tpu.vector_store %arg7[%c0_25, %c0_26], %32 {strides = array<i32>} : memref<64x256xf32, #tpu.memory_space<vmem>>, vector<64x256xf32>,
      } else {
      }
    } else {
    }
    return
  }
  func.func @transform_0(%arg0: i32, %arg1: i32, %arg2: i32) -> (i32, i32) {
    %c0_i32 = arith.constant 0 : i32
    %c0_i32_0 = arith.constant 0 : i32
    return %arg0, %c0_i32 : i32, i32
  }
  func.func @transform_1(%arg0: i32, %arg1: i32, %arg2: i32) -> (i32, i32) {
    %c1_i32 = arith.constant 1 : i32
    %0 = arith.subi %c1_i32, %arg1 : i32
    %1 = arith.muli %arg2, %0 : i32
    %c0_i32 = arith.constant 0 : i32
    %c0_i32_0 = arith.constant 0 : i32
    return %c0_i32, %1 : i32, i32
  }
  func.func @transform_2(%arg0: i32, %arg1: i32, %arg2: i32) -> (i32, i32) {
    %0 = arith.muli %arg2, %arg1 : i32
    %c0_i32 = arith.constant 0 : i32
    %c0_i32_0 = arith.constant 0 : i32
    return %c0_i32, %0 : i32, i32
  }
  func.func @transform_3(%arg0: i32, %arg1: i32, %arg2: i32) -> (i32, i32) {
    %0 = arith.muli %arg2, %arg1 : i32
    %c0_i32 = arith.constant 0 : i32
    %c0_i32_0 = arith.constant 0 : i32
    return %0, %c0_i32 : i32, i32
  }
  func.func @transform_4(%arg0: i32, %arg1: i32, %arg2: i32) -> (i32, i32) {
    %c0_i32 = arith.constant 0 : i32
    %c0_i32_0 = arith.constant 0 : i32
    return %arg0, %c0_i32 : i32, i32
  }
}

</mosaic_0001>

<llo_original>
// kernel: tpu_custom_call.1
$region0: #{tpu_custom_call.1}
  #allocation0 [shape = 'u32[]', space=smem, size = 0x4, offset = 0x4, fixed_abs, tag = 'smem constant byte address 0x4 - core index']
  #allocation1 [shape = 'u32[144,128]{1,0:T(1,128)}', space=vmem, size = 0x12000, scoped, tag = 'internal scratch']
  #allocation2 [shape = 'bf16[2,64,128]{2,1,0:T(16,128)(2,1)}', space=vmem, size = 0x8000, scoped, tag = 'scratch operand']
  #allocation3 [shape = 'f32[64,256]{1,0:T(8,128)}', space=vmem, size = 0x10000, scoped, tag = 'scratch operand']
  %s0 = inlined_call_operand.hbm [shape: f32[128,256], index: 0, kind: input, shape index: {}]
  %s1 = inlined_call_operand.hbm [shape: bf16[256,256], index: 1, kind: input, shape index: {}]
  %s2 = inlined_call_operand.hbm [shape: bf16[256,256], index: 2, kind: input, shape index: {}]
  %s3 = inlined_call_operand.hbm [shape: bf16[256,256], index: 3, kind: input, shape index: {}]
  %s4 = inlined_call_operand.hbm [shape: f32[128,256], index: 4, kind: output, shape index: {}]
  %s5 = sld [smem:[#allocation0]]
  $region81: #{tpu_custom_call.1} parent=0
    _
  %s7 = ssub.s32 1, %s5
  %s8 = scalar_select 0, %s7, %s5
  $region1: #{tpu_custom_call.1} parent=0
    #allocation4 [shape = 'u8[131072]{0}', space=vmem, size = 0x20000, scoped, tag = 'input window, operand 0']
    #allocation5 [shape = 's32[2]{0}', space=sflag, size = 0x8, scoped, tag = 'scoped memory for tpu_custom_call.1']
    #allocation6 [shape = 's32[2]{0}', space=sflag, size = 0x8, scoped, tag = 'scoped memory for tpu_custom_call.1']
    #allocation7 [shape = 'u8[131072]{0}', space=vmem, size = 0x20000, scoped, tag = 'input window, operand 1']
    #allocation8 [shape = 's32[2]{0}', space=sflag, size = 0x8, scoped, tag = 'scoped memory for tpu_custom_call.1']
    #allocation9 [shape = 'u8[131072]{0}', space=vmem, size = 0x20000, scoped, tag = 'input window, operand 2']
    #allocation10 [shape = 'u8[131072]{0}', space=vmem, size = 0x20000, scoped, tag = 'input window, operand 3']
    #allocation11 [shape = 's32[2]{0}', space=sflag, size = 0x8, scoped, tag = 'scoped memory for tpu_custom_call.1']
    #allocation12 [shape = 'u8[131072]{0}', space=vmem, size = 0x20000, scoped, tag = 'output window, operand 0']
    %9 = vsyncpa [#allocation5], 0
    %s10 = scalar_lea.sflag [#allocation5], 1
    %11 = vsyncpa %s10, 0
    %12 = vsyncpa [#allocation8], 0
    %s13 = scalar_lea.sflag [#allocation8], 1
    %14 = vsyncpa %s13, 0
    %15 = vsyncpa [#allocation11], 0
    %s16 = scalar_lea.sflag [#allocation11], 1
    %17 = vsyncpa %s16, 0
    %18 = vsyncpa [#allocation6], 0
    %s19 = scalar_lea.sflag [#allocation6], 1
    %20 = vsyncpa %s19, 0
    loop: start=0, step=1, limit=10
    $region2: #{tpu_custom_call.1} parent=1 // loop_pre_header
      _
    $region3: #{tpu_custom_call.1} parent=1 // loop_header
      %s22 = sphi 0, %s26
      %p23 = scmp.ge.s32.totalorder %s22, 10
      %s29 = sphi 0, %s48
      %s30 = sphi 0, %s44
      %s31 = sphi 0, %s40
      %s32 = sphi 0, %s29
      %s33 = sphi 0, %s30
      %s34 = sphi 0, %s31
      %s35 = sphi 0, %s32
      %s36 = sphi 0, %s33
      %s37 = sphi 0, %s34
      %s51 = sphi 0, %s53
      %s54 = sphi 0, %s51
      %s55 = sphi 0, %s54
      %s71 = sphi 0, %s55
      %s81 = sphi 0, %s83
      %s84 = sphi 0, %s81
      %s85 = sphi 0, %s84
      %s101 = sphi 0, %s85
      %s109 = sphi 0, %s111
      %s112 = sphi 0, %s109
      %s113 = sphi 0, %s112
      %s129 = sphi 0, %s113
      %s137 = sphi 0, %s139
      %s140 = sphi 0, %s137
      %s141 = sphi 0, %s140
      %s157 = sphi 0, %s141
      %s163 = sphi 0, %s165
      %s166 = sphi 0, %s163
      %s167 = sphi 0, %s166
      %s183 = sphi 0, %s167
    $region4: #{tpu_custom_call.1} parent=1 // loop_header_branch
      %25 = sbr.rel (%p23) target = $region8
    $region5: #{tpu_custom_call.1} parent=1 // loop_body
      %s27 = ssub.s32 %s22, 1
      %s28 = ssub.s32 %s22, 2
      %s38 = sadd.s32 1, %s31
      %p39 = scmp.ge.s32.totalorder %s38, 2
      %s40 = scalar_select %p39, 0, %s38
      %s41 = sadd.s32 1, %s30
      %s42 = scalar_select %p39, %s41, %s30
      %p43 = scmp.ge.s32.totalorder %s42, 2
      %s44 = scalar_select %p43, 0, %s42
      %s45 = sadd.s32 1, %s29
      %s46 = scalar_select %p43, %s45, %s29
      %p47 = scmp.ge.s32.totalorder %s46, 2
      %s48 = scalar_select %p47, 0, %s46
      %s49 = ssub.s32 %s29, %s48
      %p50 = scmp.eq.s32.totalorder %s49, 0
      %s52 = sadd.s32 %s51, 1
      %s53 = scalar_select %p50, %s51, %s52
      %p56 = pneg %p50
      %p57 = scmp.eq.s32.totalorder %s22, 7
      %p58 = por %p56, %p57
      %p59 = scmp.ne.s32.totalorder %s51, %s54
      %p60 = scmp.eq.s32.totalorder %s22, 0
      %p61 = por %p59, %p60
      %p62 = scmp.ne.s32.totalorder %s51, %s54
      %p63 = scmp.eq.s32.totalorder %s27, 7
      %p64 = por %p62, %p63
      %p65 = scmp.ne.s32.totalorder %s54, %s55
      %p66 = scmp.eq.s32.totalorder %s27, 0
      %p67 = por %p65, %p66
      %p68 = scmp.ne.s32.totalorder %s54, %s55
      %p69 = scmp.eq.s32.totalorder %s28, 7
      %p70 = por %p68, %p69
      %p72 = scmp.ne.s32.totalorder %s55, %s71
      %p73 = scmp.eq.s32.totalorder %s28, 0
      %p74 = por %p72, %p73
      %s75 = ssub.s32 1, %s30
      %s76 = smul.u32 %s31, %s75
      %s77 = ssub.s32 1, %s44
      %s78 = smul.u32 %s40, %s77
      %s79 = ssub.s32 %s76, %s78
      %p80 = scmp.eq.s32.totalorder %s79, 0
      %s82 = sadd.s32 %s81, 1
      %s83 = scalar_select %p80, %s81, %s82
      %p86 = pneg %p80
      %p87 = scmp.eq.s32.totalorder %s22, 7
      %p88 = por %p86, %p87
      %p89 = scmp.ne.s32.totalorder %s81, %s84
      %p90 = scmp.eq.s32.totalorder %s22, 0
      %p91 = por %p89, %p90
      %p92 = scmp.ne.s32.totalorder %s81, %s84
      %p93 = scmp.eq.s32.totalorder %s27, 7
      %p94 = por %p92, %p93
      %p95 = scmp.ne.s32.totalorder %s84, %s85
      %p96 = scmp.eq.s32.totalorder %s27, 0
      %p97 = por %p95, %p96
      %p98 = scmp.ne.s32.totalorder %s84, %s85
      %p99 = scmp.eq.s32.totalorder %s28, 7
      %p100 = por %p98, %p99
      %p102 = scmp.ne.s32.totalorder %s85, %s101
      %p103 = scmp.eq.s32.totalorder %s28, 0
      %p104 = por %p102, %p103
      %s105 = smul.u32 %s31, %s30
      %s106 = smul.u32 %s40, %s44
      %s107 = ssub.s32 %s105, %s106
      %p108 = scmp.eq.s32.totalorder %s107, 0
      %s110 = sadd.s32 %s109, 1
      %s111 = scalar_select %p108, %s109, %s110
      %p114 = pneg %p108
      %p115 = scmp.eq.s32.totalorder %s22, 7
      %p116 = por %p114, %p115
      %p117 = scmp.ne.s32.totalorder %s109, %s112
      %p118 = scmp.eq.s32.totalorder %s22, 0
      %p119 = por %p117, %p118
      %p120 = scmp.ne.s32.totalorder %s109, %s112
      %p121 = scmp.eq.s32.totalorder %s27, 7
      %p122 = por %p120, %p121
      %p123 = scmp.ne.s32.totalorder %s112, %s113
      %p124 = scmp.eq.s32.totalorder %s27, 0
      %p125 = por %p123, %p124
      %p126 = scmp.ne.s32.totalorder %s112, %s113
      %p127 = scmp.eq.s32.totalorder %s28, 7
      %p128 = por %p126, %p127
      %p130 = scmp.ne.s32.totalorder %s113, %s129
      %p131 = scmp.eq.s32.totalorder %s28, 0
      %p132 = por %p130, %p131
      %s133 = smul.u32 %s31, %s30
      %s134 = smul.u32 %s40, %s44
      %s135 = ssub.s32 %s133, %s134
      %p136 = scmp.eq.s32.totalorder %s135, 0
      %s138 = sadd.s32 %s137, 1
      %s139 = scalar_select %p136, %s137, %s138
      %p142 = pneg %p136
      %p143 = scmp.eq.s32.totalorder %s22, 7
      %p144 = por %p142, %p143
      %p145 = scmp.ne.s32.totalorder %s137, %s140
      %p146 = scmp.eq.s32.totalorder %s22, 0
      %p147 = por %p145, %p146
      %p148 = scmp.ne.s32.totalorder %s137, %s140
      %p149 = scmp.eq.s32.totalorder %s27, 7
      %p150 = por %p148, %p149
      %p151 = scmp.ne.s32.totalorder %s140, %s141
      %p152 = scmp.eq.s32.totalorder %s27, 0
      %p153 = por %p151, %p152
      %p154 = scmp.ne.s32.totalorder %s140, %s141
      %p155 = scmp.eq.s32.totalorder %s28, 7
      %p156 = por %p154, %p155
      %p158 = scmp.ne.s32.totalorder %s141, %s157
      %p159 = scmp.eq.s32.totalorder %s28, 0
      %p160 = por %p158, %p159
      %s161 = ssub.s32 %s29, %s48
      %p162 = scmp.eq.s32.totalorder %s161, 0
      %s164 = sadd.s32 %s163, 1
      %s165 = scalar_select %p162, %s163, %s164
      %p168 = pneg %p162
      %p169 = scmp.eq.s32.totalorder %s22, 7
      %p170 = por %p168, %p169
      %p171 = scmp.ne.s32.totalorder %s163, %s166
      %p172 = scmp.eq.s32.totalorder %s22, 0
      %p173 = por %p171, %p172
      %p174 = scmp.ne.s32.totalorder %s163, %s166
      %p175 = scmp.eq.s32.totalorder %s27, 7
      %p176 = por %p174, %p175
      %p177 = scmp.ne.s32.totalorder %s166, %s167
      %p178 = scmp.eq.s32.totalorder %s27, 0
      %p179 = por %p177, %p178
      %p180 = scmp.ne.s32.totalorder %s166, %s167
      %p181 = scmp.eq.s32.totalorder %s28, 7
      %p182 = por %p180, %p181
      %p184 = scmp.ne.s32.totalorder %s167, %s183
      %p185 = scmp.eq.s32.totalorder %s28, 0
      %p186 = por %p184, %p185
      %p187 = scmp.le.s32.totalorder 1, %s22
      %p188 = scmp.lt.s32.totalorder %s22, 9
      %p189 = pnand %p187, %p188
      %p190 = pneg %p189
      // Predicated region
      $region9: #{tpu_custom_call.1} parent=5 // pred_check
        _
      $region10: #{tpu_custom_call.1} parent=5 // pred_check_branch
        %192 = sbr.rel (%p189) target = $region12
      $region11: #{tpu_custom_call.1} parent=5 // pred_region
        %s193 = ssub.s32 %s22, 1
      $region12: #{tpu_custom_call.1} parent=5 // pred_fallthru
        _
      %p194 = scmp.lt.s32.totalorder %s22, 8
      // Predicated region
      $region13: #{tpu_custom_call.1} parent=5 // pred_check
        %p195 = pneg %p194
      $region14: #{tpu_custom_call.1} parent=5 // pred_check_branch
        %197 = sbr.rel (%p195) target = $region16
      $region15: #{tpu_custom_call.1} parent=5 // pred_region
        // Predicated region
        $region17: #{tpu_custom_call.1} parent=15 // pred_check
          %p198 = pneg %p61
        $region18: #{tpu_custom_call.1} parent=15 // pred_check_branch
          %200 = sbr.rel (%p198) target = $region20
        $region19: #{tpu_custom_call.1} parent=15 // pred_region
          %s201 = sand.u32 %s51, 1
          %s202 = scalar_lea.sflag [#allocation5], %s201
          %s203 = sand.u32 %s51, 1
          %s204 = smul.addr %s203, 128
          %s205 = scalar_lea.vmem [#allocation4], %s204
          %s206 = smul.u32 8, %s29
          %s208 = ssub.s32 2048, 2048
          %209 = vsyncadd %s202, %s208
          %s210 = smul.addr %s206, 2
          %s211 = smul.addr %s210, 128
          %s212 = scalar_lea.hbm %s0, %s211
          %s213 = sshll.u32 %s205, 4
          %s214 = int_to_ptr.vmem [resolvable:$true] %s213
          %219 = dma.hbm_to_vmem [thread:$0]  %s212, 2048, %s214, %s202, 256, 256, 16
        $region20: #{tpu_custom_call.1} parent=15 // pred_fallthru
          _
        // Predicated region
        $region21: #{tpu_custom_call.1} parent=15 // pred_check
          %p220 = pneg %p91
        $region22: #{tpu_custom_call.1} parent=15 // pred_check_branch
          %222 = sbr.rel (%p220) target = $region24
        $region23: #{tpu_custom_call.1} parent=15 // pred_region
          %s223 = sand.u32 %s22, 1
          %s224 = scalar_lea.sflag [#allocation8], %s223
          %s225 = sand.u32 %s81, 1
          %s226 = smul.addr %s225, 128
          %s227 = scalar_lea.vmem [#allocation7], %s226
          %s228 = ssub.s32 1, %s30
          %s229 = smul.u32 %s31, %s228
          %s231 = ssub.s32 2048, 2048
          %232 = vsyncadd %s224, %s231
          %s233 = smul.addr %s229, 64
          %s234 = scalar_lea.hbm %s1, %s233
          %s235 = sshll.u32 %s227, 4
          %s236 = int_to_ptr.vmem [resolvable:$true] %s235
          %241 = dma.hbm_to_vmem [thread:$0]  %s234, 2048, %s236, %s224, 128, 64, 4
        $region24: #{tpu_custom_call.1} parent=15 // pred_fallthru
          _
        // Predicated region
        $region25: #{tpu_custom_call.1} parent=15 // pred_check
          %p242 = pneg %p119
        $region26: #{tpu_custom_call.1} parent=15 // pred_check_branch
          %244 = sbr.rel (%p242) target = $region28
        $region27: #{tpu_custom_call.1} parent=15 // pred_region
          %s245 = sand.u32 %s22, 1
          %s246 = scalar_lea.sflag [#allocation8], %s245
          %s247 = sand.u32 %s109, 1
          %s248 = smul.addr %s247, 128
          %s249 = scalar_lea.vmem [#allocation9], %s248
          %s250 = smul.u32 %s31, %s30
          %s252 = ssub.s32 2048, 2048
          %253 = vsyncadd %s246, %s252
          %s254 = smul.addr %s250, 64
          %s255 = scalar_lea.hbm %s2, %s254
          %s256 = sshll.u32 %s249, 4
          %s257 = int_to_ptr.vmem [resolvable:$true] %s256
          %262 = dma.hbm_to_vmem [thread:$0]  %s255, 2048, %s257, %s246, 128, 64, 4
        $region28: #{tpu_custom_call.1} parent=15 // pred_fallthru
          _
        // Predicated region
        $region29: #{tpu_custom_call.1} parent=15 // pred_check
          %p263 = pneg %p147
        $region30: #{tpu_custom_call.1} parent=15 // pred_check_branch
          %265 = sbr.rel (%p263) target = $region32
        $region31: #{tpu_custom_call.1} parent=15 // pred_region
          %s266 = sand.u32 %s137, 1
          %s267 = scalar_lea.sflag [#allocation11], %s266
          %s268 = sand.u32 %s137, 1
          %s269 = smul.addr %s268, 128
          %s270 = scalar_lea.vmem [#allocation10], %s269
          %s271 = smul.u32 %s31, %s30
          %s272 = smul.u32 16, %s271
          %s274 = ssub.s32 2048, 2048
          %275 = vsyncadd %s267, %s274
          %s276 = smul.addr %s272, 2
          %s277 = smul.addr %s276, 64
          %s278 = scalar_lea.hbm %s3, %s277
          %s279 = sshll.u32 %s270, 4
          %s280 = int_to_ptr.vmem [resolvable:$true] %s279
          %285 = dma.hbm_to_vmem [thread:$0]  %s278, 2048, %s280, %s267, 128, 128, 8
        $region32: #{tpu_custom_call.1} parent=15 // pred_fallthru
          _
      $region16: #{tpu_custom_call.1} parent=5 // pred_fallthru
        _
      %p286 = scmp.le.s32.totalorder 1, %s22
      %p287 = scmp.lt.s32.totalorder %s22, 9
      %p288 = pnand %p286, %p287
      %p289 = pneg %p288
      // Predicated region
      $region33: #{tpu_custom_call.1} parent=5 // pred_check
        _
      $region34: #{tpu_custom_call.1} parent=5 // pred_check_branch
        %291 = sbr.rel (%p288) target = $region36
      $region35: #{tpu_custom_call.1} parent=5 // pred_region
        %s292 = ssub.s32 %s22, 1
        %s293 = sand.u32 %s54, 1
        %s294 = scalar_lea.sflag [#allocation5], %s293
        %s295 = sand.u32 %s54, 1
        %s296 = smul.addr %s295, 128
        %s297 = scalar_lea.vmem [#allocation4], %s296
        // Predicated region
        $region37: #{tpu_custom_call.1} parent=35 // pred_check
          %p298 = pneg %p67
        $region38: #{tpu_custom_call.1} parent=35 // pred_check_branch
          %300 = sbr.rel (%p298) target = $region40
        $region39: #{tpu_custom_call.1} parent=35 // pred_region
          %301 = dma.done %s294, 2048
        $region40: #{tpu_custom_call.1} parent=35 // pred_fallthru
          _
        %s302 = sand.u32 %s27, 1
        %s303 = scalar_lea.sflag [#allocation8], %s302
        %s304 = sand.u32 %s84, 1
        %s305 = smul.addr %s304, 128
        %s306 = scalar_lea.vmem [#allocation7], %s305
        // Predicated region
        $region41: #{tpu_custom_call.1} parent=35 // pred_check
          %p307 = pneg %p97
        $region42: #{tpu_custom_call.1} parent=35 // pred_check_branch
          %309 = sbr.rel (%p307) target = $region44
        $region43: #{tpu_custom_call.1} parent=35 // pred_region
          %310 = dma.done %s303, 2048
        $region44: #{tpu_custom_call.1} parent=35 // pred_fallthru
          _
        %s311 = sand.u32 %s27, 1
        %s312 = scalar_lea.sflag [#allocation8], %s311
        %s313 = sand.u32 %s112, 1
        %s314 = smul.addr %s313, 128
        %s315 = scalar_lea.vmem [#allocation9], %s314
        // Predicated region
        $region45: #{tpu_custom_call.1} parent=35 // pred_check
          %p316 = pneg %p125
        $region46: #{tpu_custom_call.1} parent=35 // pred_check_branch
          %318 = sbr.rel (%p316) target = $region48
        $region47: #{tpu_custom_call.1} parent=35 // pred_region
          %319 = dma.done %s312, 2048
        $region48: #{tpu_custom_call.1} parent=35 // pred_fallthru
          _
        %s320 = sand.u32 %s140, 1
        %s321 = scalar_lea.sflag [#allocation11], %s320
        %s322 = sand.u32 %s140, 1
        %s323 = smul.addr %s322, 128
        %s324 = scalar_lea.vmem [#allocation10], %s323
        // Predicated region
        $region49: #{tpu_custom_call.1} parent=35 // pred_check
          %p325 = pneg %p153
        $region50: #{tpu_custom_call.1} parent=35 // pred_check_branch
          %327 = sbr.rel (%p325) target = $region52
        $region51: #{tpu_custom_call.1} parent=35 // pred_region
          %328 = dma.done %s321, 2048
        $region52: #{tpu_custom_call.1} parent=35 // pred_fallthru
          _
        %s329 = sand.u32 %s54, 1
        %s330 = scalar_lea.sflag [#allocation5], %s329
        %s331 = sand.u32 %s54, 1
        %s332 = smul.addr %s331, 128
        %s333 = scalar_lea.vmem [#allocation4], %s332
        %p334 = pneg %p67
        %p335 = pneg %p64
        %s336 = sand.u32 %s27, 1
        %s337 = scalar_lea.sflag [#allocation8], %s336
        %s338 = sand.u32 %s84, 1
        %s339 = smul.addr %s338, 128
        %s340 = scalar_lea.vmem [#allocation7], %s339
        %p341 = pneg %p97
        %p342 = pneg %p94
        %s343 = sand.u32 %s27, 1
        %s344 = scalar_lea.sflag [#allocation8], %s343
        %s345 = sand.u32 %s112, 1
        %s346 = smul.addr %s345, 128
        %s347 = scalar_lea.vmem [#allocation9], %s346
        %p348 = pneg %p125
        %p349 = pneg %p122
        %s350 = sand.u32 %s140, 1
        %s351 = scalar_lea.sflag [#allocation11], %s350
        %s352 = sand.u32 %s140, 1
        %s353 = smul.addr %s352, 128
        %s354 = scalar_lea.vmem [#allocation10], %s353
        %p355 = pneg %p153
        %p356 = pneg %p150
        %p357 = pneg %p179
        %p358 = pneg %p176
        %s359 = sand.u32 %s166, 1
        %s360 = scalar_lea.sflag [#allocation6], %s359
        %s361 = sand.u32 %s166, 1
        %s362 = smul.addr %s361, 128
        %s363 = scalar_lea.vmem [#allocation12], %s362
        %s364 = smul.u32 8, %s32
        %s365 = ssub.s32 1, %s33
        %s366 = smul.u32 %s34, %s365
        %s367 = smul.u32 %s34, %s33
        %s368 = smul.u32 %s34, %s33
        %s369 = smul.u32 16, %s368
        %s370 = smul.u32 8, %s32
        %p372 = scmp.eq.s32.totalorder %s33, 0
        // Predicated region
        $region53: #{tpu_custom_call.1} parent=35 // pred_check
          %p373 = pneg %p372
        $region54: #{tpu_custom_call.1} parent=35 // pred_check_branch
          %375 = sbr.rel (%p373) target = $region56
        $region55: #{tpu_custom_call.1} parent=35 // pred_region
          %v376 = vld [vmem:[%s297] sm:$0xff]
          %v377 = vld [vmem:[%s297 + $0x8] sm:$0xff]
          %v378 = vld [vmem:[%s297 + $0x10] sm:$0xff]
          %v379 = vld [vmem:[%s297 + $0x18] sm:$0xff]
          %v380 = vld [vmem:[%s297 + $0x20] sm:$0xff]
          %v381 = vld [vmem:[%s297 + $0x28] sm:$0xff]
          %v382 = vld [vmem:[%s297 + $0x30] sm:$0xff]
          %v383 = vld [vmem:[%s297 + $0x38] sm:$0xff]
          %v384 = vld [vmem:[%s297 + $0x40] sm:$0xff]
          %v385 = vld [vmem:[%s297 + $0x48] sm:$0xff]
          %v386 = vld [vmem:[%s297 + $0x50] sm:$0xff]
          %v387 = vld [vmem:[%s297 + $0x58] sm:$0xff]
          %v388 = vld [vmem:[%s297 + $0x60] sm:$0xff]
          %v389 = vld [vmem:[%s297 + $0x68] sm:$0xff]
          %v390 = vld [vmem:[%s297 + $0x70] sm:$0xff]
          %v391 = vld [vmem:[%s297 + $0x78] sm:$0xff]
          %v392 = vpack.c.bf16 %v378, %v376
          %v393 = vpack.c.bf16 %v379, %v377
          %v394 = vpack.c.bf16 %v382, %v380
          %v395 = vpack.c.bf16 %v383, %v381
          %v396 = vpack.c.bf16 %v386, %v384
          %v397 = vpack.c.bf16 %v387, %v385
          %v398 = vpack.c.bf16 %v390, %v388
          %v399 = vpack.c.bf16 %v391, %v389
          %v400 = vld [vmem:[%s306] sm:$0xf]
          %v401 = vld [vmem:[%s306 + $0x4] sm:$0xf]
          %v402 = vld [vmem:[%s306 + $0x8] sm:$0xf]
          %v403 = vld [vmem:[%s306 + $0xc] sm:$0xf]
          %v404 = vld [vmem:[%s306 + $0x10] sm:$0xf]
          %v405 = vld [vmem:[%s306 + $0x14] sm:$0xf]
          %v406 = vld [vmem:[%s306 + $0x18] sm:$0xf]
          %v407 = vld [vmem:[%s306 + $0x1c] sm:$0xf]
          %v408 = vld [vmem:[%s306 + $0x20] sm:$0xf]
          %v409 = vld [vmem:[%s306 + $0x24] sm:$0xf]
          %v410 = vld [vmem:[%s306 + $0x28] sm:$0xf]
          %v411 = vld [vmem:[%s306 + $0x2c] sm:$0xf]
          %v412 = vld [vmem:[%s306 + $0x30] sm:$0xf]
          %v413 = vld [vmem:[%s306 + $0x34] sm:$0xf]
          %v414 = vld [vmem:[%s306 + $0x38] sm:$0xf]
          %v415 = vld [vmem:[%s306 + $0x3c] sm:$0xf]
          %v416 = vld [vmem:[%s306 + $0x40] sm:$0xf]
          %v417 = vld [vmem:[%s306 + $0x44] sm:$0xf]
          %v418 = vld [vmem:[%s306 + $0x48] sm:$0xf]
          %v419 = vld [vmem:[%s306 + $0x4c] sm:$0xf]
          %v420 = vld [vmem:[%s306 + $0x50] sm:$0xf]
          %v421 = vld [vmem:[%s306 + $0x54] sm:$0xf]
          %v422 = vld [vmem:[%s306 + $0x58] sm:$0xf]
          %v423 = vld [vmem:[%s306 + $0x5c] sm:$0xf]
          %v424 = vld [vmem:[%s306 + $0x60] sm:$0xf]
          %v425 = vld [vmem:[%s306 + $0x64] sm:$0xf]
          %v426 = vld [vmem:[%s306 + $0x68] sm:$0xf]
          %v427 = vld [vmem:[%s306 + $0x6c] sm:$0xf]
          %v428 = vld [vmem:[%s306 + $0x70] sm:$0xf]
          %v429 = vld [vmem:[%s306 + $0x74] sm:$0xf]
          %v430 = vld [vmem:[%s306 + $0x78] sm:$0xf]
          %v431 = vld [vmem:[%s306 + $0x7c] sm:$0xf]
          %v464 = vunpack.c.l.b16 %v400
          %v465 = vunpack.c.l.b16 %v401
          %v466 = vunpack.c.l.b16 %v402
          %v467 = vunpack.c.l.b16 %v403
          %v468 = vunpack.c.l.b16 %v404
          %v469 = vunpack.c.l.b16 %v405
          %v470 = vunpack.c.l.b16 %v406
          %v471 = vunpack.c.l.b16 %v407
          %v472 = vunpack.c.l.b16 %v408
          %v473 = vunpack.c.l.b16 %v409
          %v474 = vunpack.c.l.b16 %v410
          %v475 = vunpack.c.l.b16 %v411
          %v476 = vunpack.c.l.b16 %v412
          %v477 = vunpack.c.l.b16 %v413
          %v478 = vunpack.c.l.b16 %v414
          %v479 = vunpack.c.l.b16 %v415
          %v480 = vunpack.c.l.b16 %v416
          %v481 = vunpack.c.l.b16 %v417
          %v482 = vunpack.c.l.b16 %v418
          %v483 = vunpack.c.l.b16 %v419
          %v484 = vunpack.c.l.b16 %v420
          %v485 = vunpack.c.l.b16 %v421
          %v486 = vunpack.c.l.b16 %v422
          %v487 = vunpack.c.l.b16 %v423
          %v488 = vunpack.c.l.b16 %v424
          %v489 = vunpack.c.l.b16 %v425
          %v490 = vunpack.c.l.b16 %v426
          %v491 = vunpack.c.l.b16 %v427
          %v492 = vunpack.c.l.b16 %v428
          %v493 = vunpack.c.l.b16 %v429
          %v494 = vunpack.c.l.b16 %v430
          %v495 = vunpack.c.l.b16 %v431
          %v496 = vpack.c.b16 %v465, %v464
          %v497 = vpack.c.b16 %v467, %v466
          %v498 = vpack.c.b16 %v469, %v468
          %v499 = vpack.c.b16 %v471, %v470
          %v500 = vpack.c.b16 %v473, %v472
          %v501 = vpack.c.b16 %v475, %v474
          %v502 = vpack.c.b16 %v477, %v476
          %v503 = vpack.c.b16 %v479, %v478
          %v504 = vpack.c.b16 %v481, %v480
          %v505 = vpack.c.b16 %v483, %v482
          %v506 = vpack.c.b16 %v485, %v484
          %v507 = vpack.c.b16 %v487, %v486
          %v508 = vpack.c.b16 %v489, %v488
          %v509 = vpack.c.b16 %v491, %v490
          %v510 = vpack.c.b16 %v493, %v492
          %v511 = vpack.c.b16 %v495, %v494
          %528 = vmatprep.subr.bf16.mxu0 0
          %529 = vmatpush1.bf16.msra.mxu0 %v496
          %530 = vmatprep.subr.bf16.mxu0 0
          %531 = vmatpush1.bf16.msra.mxu0 %v497
          %532 = vmatprep.subr.bf16.mxu0 0
          %533 = vmatpush1.bf16.msra.mxu0 %v498
          %534 = vmatprep.subr.bf16.mxu0 0
          %535 = vmatpush1.bf16.msra.mxu0 %v499
          %536 = vmatprep.subr.bf16.mxu0 0
          %537 = vmatpush1.bf16.msra.mxu0 %v500
          %538 = vmatprep.subr.bf16.mxu0 0
          %539 = vmatpush1.bf16.msra.mxu0 %v501
          %540 = vmatprep.subr.bf16.mxu0 0
          %541 = vmatpush1.bf16.msra.mxu0 %v502
          %542 = vmatprep.subr.bf16.mxu0 0
          %543 = vmatpush1.bf16.msra.mxu0 %v503
          %544 = vmatprep.subr.bf16.mxu0 0
          %545 = vmatpush1.bf16.msra.mxu0 %v504
          %546 = vmatprep.subr.bf16.mxu0 0
          %547 = vmatpush1.bf16.msra.mxu0 %v505
          %548 = vmatprep.subr.bf16.mxu0 0
          %549 = vmatpush1.bf16.msra.mxu0 %v506
          %550 = vmatprep.subr.bf16.mxu0 0
          %551 = vmatpush1.bf16.msra.mxu0 %v507
          %552 = vmatprep.subr.bf16.mxu0 0
          %553 = vmatpush1.bf16.msra.mxu0 %v508
          %554 = vmatprep.subr.bf16.mxu0 0
          %555 = vmatpush1.bf16.msra.mxu0 %v509
          %556 = vmatprep.subr.bf16.mxu0 0
          %557 = vmatpush1.bf16.msra.mxu0 %v510
          %558 = vmatprep.subr.bf16.mxu0 0
          %559 = vmatpush1.bf16.msra.mxu0 %v511
          %560 = vmatprep.mubr.bf16.mxu0 %v393
          %561 = vmatmul.mubr.bf16.gmra.mrb[0].mxu0 %v392
          %v562 = vpop.f32.mrb[0].mxu0
          %v563 = vadd.f32 0.0, %v562
          %v564 = vpop.f32.mrb[0].mxu0
          %v565 = vpop.f32.mrb[0].mxu0
          %v566 = vadd.f32 0.0, %v565
          %v567 = vpop.f32.mrb[0].mxu0
          %568 = vmatprep.mubr.bf16.mxu0 %v395
          %569 = vmatmul.mubr.bf16.gmra.mrb[0].mxu0 %v394
          %v570 = vpop.f32.mrb[0].mxu0
          %v571 = vadd.f32 0.0, %v570
          %v572 = vpop.f32.mrb[0].mxu0
          %v573 = vpop.f32.mrb[0].mxu0
          %v574 = vadd.f32 0.0, %v573
          %v575 = vpop.f32.mrb[0].mxu0
          %576 = vmatprep.mubr.bf16.mxu0 %v397
          %577 = vmatmul.mubr.bf16.gmra.mrb[0].mxu0 %v396
          %v578 = vpop.f32.mrb[0].mxu0
          %v579 = vadd.f32 0.0, %v578
          %v580 = vpop.f32.mrb[0].mxu0
          %v581 = vpop.f32.mrb[0].mxu0
          %v582 = vadd.f32 0.0, %v581
          %v583 = vpop.f32.mrb[0].mxu0
          %584 = vmatprep.mubr.bf16.mxu0 %v399
          %585 = vmatmul.mubr.bf16.gmra.mrb[0].mxu0 %v398
          %v586 = vpop.f32.mrb[0].mxu0
          %v587 = vadd.f32 0.0, %v586
          %v588 = vpop.f32.mrb[0].mxu0
          %v589 = vpop.f32.mrb[0].mxu0
          %v590 = vadd.f32 0.0, %v589
          %v591 = vpop.f32.mrb[0].mxu0
          %592 = vdwg.mxu0
          %v593 = vmul.f32 %v563, %v563
          %v594 = vmul.f32 %v566, %v566
          %v595 = vmul.f32 %v571, %v571
          %v596 = vmul.f32 %v574, %v574
          %v597 = vmul.f32 %v579, %v579
          %v598 = vmul.f32 %v582, %v582
          %v599 = vmul.f32 %v587, %v587
          %v600 = vmul.f32 %v590, %v590
          %v601 = vmul.f32 %v563, %v593
          %v602 = vmul.f32 %v566, %v594
          %v603 = vmul.f32 %v571, %v595
          %v604 = vmul.f32 %v574, %v596
          %v605 = vmul.f32 %v579, %v597
          %v606 = vmul.f32 %v582, %v598
          %v607 = vmul.f32 %v587, %v599
          %v608 = vmul.f32 %v590, %v600
          %v609 = vmul.f32 %v601, 0.044715
          %v610 = vmul.f32 %v602, 0.044715
          %v611 = vmul.f32 %v603, 0.044715
          %v612 = vmul.f32 %v604, 0.044715
          %v613 = vmul.f32 %v605, 0.044715
          %v614 = vmul.f32 %v606, 0.044715
          %v615 = vmul.f32 %v607, 0.044715
          %v616 = vmul.f32 %v608, 0.044715
          %v617 = vadd.f32 %v563, %v609
          %v618 = vadd.f32 %v566, %v610
          %v619 = vadd.f32 %v571, %v611
          %v620 = vadd.f32 %v574, %v612
          %v621 = vadd.f32 %v579, %v613
          %v622 = vadd.f32 %v582, %v614
          %v623 = vadd.f32 %v587, %v615
          %v624 = vadd.f32 %v590, %v616
          %v625 = vmul.f32 %v617, 0.7978846
          %v626 = vmul.f32 %v618, 0.7978846
          %v627 = vmul.f32 %v619, 0.7978846
          %v628 = vmul.f32 %v620, 0.7978846
          %v629 = vmul.f32 %v621, 0.7978846
          %v630 = vmul.f32 %v622, 0.7978846
          %v631 = vmul.f32 %v623, 0.7978846
          %v632 = vmul.f32 %v624, 0.7978846
          %v633 = vtanh.pop %v625
          %v634 = vtanh.pop %v626
          %v635 = vtanh.pop %v627
          %v636 = vtanh.pop %v628
          %v637 = vtanh.pop %v629
          %v638 = vtanh.pop %v630
          %v639 = vtanh.pop %v631
          %v640 = vtanh.pop %v632
          %v641 = vadd.f32 %v633, 1.0
          %v642 = vadd.f32 %v634, 1.0
          %v643 = vadd.f32 %v635, 1.0
          %v644 = vadd.f32 %v636, 1.0
          %v645 = vadd.f32 %v637, 1.0
          %v646 = vadd.f32 %v638, 1.0
          %v647 = vadd.f32 %v639, 1.0
          %v648 = vadd.f32 %v640, 1.0
          %v649 = vmul.f32 %v641, 0.5
          %v650 = vmul.f32 %v642, 0.5
          %v651 = vmul.f32 %v643, 0.5
          %v652 = vmul.f32 %v644, 0.5
          %v653 = vmul.f32 %v645, 0.5
          %v654 = vmul.f32 %v646, 0.5
          %v655 = vmul.f32 %v647, 0.5
          %v656 = vmul.f32 %v648, 0.5
          %v657 = vmul.f32 %v563, %v649
          %v658 = vmul.f32 %v566, %v650
          %v659 = vmul.f32 %v571, %v651
          %v660 = vmul.f32 %v574, %v652
          %v661 = vmul.f32 %v579, %v653
          %v662 = vmul.f32 %v582, %v654
          %v663 = vmul.f32 %v587, %v655
          %v664 = vmul.f32 %v590, %v656
          %v665 = vpack.c.bf16 %v658, %v657
          %v666 = vpack.c.bf16 %v660, %v659
          %v667 = vpack.c.bf16 %v662, %v661
          %v668 = vpack.c.bf16 %v664, %v663
          %s669 = smul.u32 %s34, 4
          %s670 = smul.addr %s669, 8
          %s671 = scalar_lea.vmem [#allocation2], %s670
          %672 = vst [vmem:[%s671] sm:$0xff] %v665
          %673 = vst [vmem:[%s671 + $0x8] sm:$0xff] %v666
          %674 = vst [vmem:[%s671 + $0x10] sm:$0xff] %v667
          %675 = vst [vmem:[%s671 + $0x18] sm:$0xff] %v668
        $region56: #{tpu_custom_call.1} parent=35 // pred_fallthru
          _
        %p676 = scmp.eq.s32.totalorder %s33, 1
        // Predicated region
        $region57: #{tpu_custom_call.1} parent=35 // pred_check
          %p677 = pneg %p676
        $region58: #{tpu_custom_call.1} parent=35 // pred_check_branch
          %679 = sbr.rel (%p677) target = $region60
        $region59: #{tpu_custom_call.1} parent=35 // pred_region
          %p680 = scmp.eq.s32.totalorder %s34, 0
          // Predicated region
          $region61: #{tpu_custom_call.1} parent=59 // pred_check
            %p681 = pneg %p680
          $region62: #{tpu_custom_call.1} parent=59 // pred_check_branch
            %683 = sbr.rel (%p681) target = $region64
          $region63: #{tpu_custom_call.1} parent=59 // pred_region
            %684 = vst [vmem:[#allocation3] sm:$0xff] 0.0
            %685 = vst [vmem:[#allocation3 + $0x8] sm:$0xff] 0.0
            %686 = vst [vmem:[#allocation3 + $0x10] sm:$0xff] 0.0
            %687 = vst [vmem:[#allocation3 + $0x18] sm:$0xff] 0.0
            %688 = vst [vmem:[#allocation3 + $0x20] sm:$0xff] 0.0
            %689 = vst [vmem:[#allocation3 + $0x28] sm:$0xff] 0.0
            %690 = vst [vmem:[#allocation3 + $0x30] sm:$0xff] 0.0
            %691 = vst [vmem:[#allocation3 + $0x38] sm:$0xff] 0.0
            %692 = vst [vmem:[#allocation3 + $0x40] sm:$0xff] 0.0
            %693 = vst [vmem:[#allocation3 + $0x48] sm:$0xff] 0.0
            %694 = vst [vmem:[#allocation3 + $0x50] sm:$0xff] 0.0
            %695 = vst [vmem:[#allocation3 + $0x58] sm:$0xff] 0.0
            %696 = vst [vmem:[#allocation3 + $0x60] sm:$0xff] 0.0
            %697 = vst [vmem:[#allocation3 + $0x68] sm:$0xff] 0.0
            %698 = vst [vmem:[#allocation3 + $0x70] sm:$0xff] 0.0
            %699 = vst [vmem:[#allocation3 + $0x78] sm:$0xff] 0.0
          $region64: #{tpu_custom_call.1} parent=59 // pred_fallthru
            _
          %v700 = vld [vmem:[#allocation2] sm:$0xff]
          %v701 = vld [vmem:[#allocation2 + $0x8] sm:$0xff]
          %v702 = vld [vmem:[#allocation2 + $0x10] sm:$0xff]
          %v703 = vld [vmem:[#allocation2 + $0x18] sm:$0xff]
          %v704 = vld [vmem:[%s315] sm:$0xf]
          %v705 = vld [vmem:[%s315 + $0x4] sm:$0xf]
          %v706 = vld [vmem:[%s315 + $0x8] sm:$0xf]
          %v707 = vld [vmem:[%s315 + $0xc] sm:$0xf]
          %v708 = vld [vmem:[%s315 + $0x10] sm:$0xf]
          %v709 = vld [vmem:[%s315 + $0x14] sm:$0xf]
          %v710 = vld [vmem:[%s315 + $0x18] sm:$0xf]
          %v711 = vld [vmem:[%s315 + $0x1c] sm:$0xf]
          %v712 = vld [vmem:[%s315 + $0x20] sm:$0xf]
          %v713 = vld [vmem:[%s315 + $0x24] sm:$0xf]
          %v714 = vld [vmem:[%s315 + $0x28] sm:$0xf]
          %v715 = vld [vmem:[%s315 + $0x2c] sm:$0xf]
          %v716 = vld [vmem:[%s315 + $0x30] sm:$0xf]
          %v717 = vld [vmem:[%s315 + $0x34] sm:$0xf]
          %v718 = vld [vmem:[%s315 + $0x38] sm:$0xf]
          %v719 = vld [vmem:[%s315 + $0x3c] sm:$0xf]
          %s720 = scalar_lea.vmem [#allocation2], 32
          %v721 = vld [vmem:[%s720] sm:$0xff]
          %v722 = vld [vmem:[%s720 + $0x8] sm:$0xff]
          %v723 = vld [vmem:[%s720 + $0x10] sm:$0xff]
          %v724 = vld [vmem:[%s720 + $0x18] sm:$0xff]
          %v725 = vld [vmem:[%s315 + $0x40] sm:$0xf]
          %v726 = vld [vmem:[%s315 + $0x44] sm:$0xf]
          %v727 = vld [vmem:[%s315 + $0x48] sm:$0xf]
          %v728 = vld [vmem:[%s315 + $0x4c] sm:$0xf]
          %v729 = vld [vmem:[%s315 + $0x50] sm:$0xf]
          %v730 = vld [vmem:[%s315 + $0x54] sm:$0xf]
          %v731 = vld [vmem:[%s315 + $0x58] sm:$0xf]
          %v732 = vld [vmem:[%s315 + $0x5c] sm:$0xf]
          %v733 = vld [vmem:[%s315 + $0x60] sm:$0xf]
          %v734 = vld [vmem:[%s315 + $0x64] sm:$0xf]
          %v735 = vld [vmem:[%s315 + $0x68] sm:$0xf]
          %v736 = vld [vmem:[%s315 + $0x6c] sm:$0xf]
          %v737 = vld [vmem:[%s315 + $0x70] sm:$0xf]
          %v738 = vld [vmem:[%s315 + $0x74] sm:$0xf]
          %v739 = vld [vmem:[%s315 + $0x78] sm:$0xf]
          %v740 = vld [vmem:[%s315 + $0x7c] sm:$0xf]
          %v757 = vunpack.c.l.b16 %v725
          %v758 = vunpack.c.l.b16 %v726
          %v759 = vunpack.c.l.b16 %v727
          %v760 = vunpack.c.l.b16 %v728
          %v761 = vunpack.c.l.b16 %v729
          %v762 = vunpack.c.l.b16 %v730
          %v763 = vunpack.c.l.b16 %v731
          %v764 = vunpack.c.l.b16 %v732
          %v765 = vunpack.c.l.b16 %v733
          %v766 = vunpack.c.l.b16 %v734
          %v767 = vunpack.c.l.b16 %v735
          %v768 = vunpack.c.l.b16 %v736
          %v769 = vunpack.c.l.b16 %v737
          %v770 = vunpack.c.l.b16 %v738
          %v771 = vunpack.c.l.b16 %v739
          %v772 = vunpack.c.l.b16 %v740
          %v773 = vpack.c.b16 %v758, %v757
          %v774 = vpack.c.b16 %v760, %v759
          %v775 = vpack.c.b16 %v762, %v761
          %v776 = vpack.c.b16 %v764, %v763
          %v777 = vpack.c.b16 %v766, %v765
          %v778 = vpack.c.b16 %v768, %v767
          %v779 = vpack.c.b16 %v770, %v769
          %v780 = vpack.c.b16 %v772, %v771
          %789 = vmatprep.subr.bf16.mxu0 0
          %790 = vmatpush1.bf16.msra.mxu0 %v773
          %791 = vmatprep.subr.bf16.mxu0 0
          %792 = vmatpush1.bf16.msra.mxu0 %v774
          %793 = vmatprep.subr.bf16.mxu0 0
          %794 = vmatpush1.bf16.msra.mxu0 %v775
          %795 = vmatprep.subr.bf16.mxu0 0
          %796 = vmatpush1.bf16.msra.mxu0 %v776
          %797 = vmatprep.subr.bf16.mxu0 0
          %798 = vmatpush1.bf16.msra.mxu0 %v777
          %799 = vmatprep.subr.bf16.mxu0 0
          %800 = vmatpush1.bf16.msra.mxu0 %v778
          %801 = vmatprep.subr.bf16.mxu0 0
          %802 = vmatpush1.bf16.msra.mxu0 %v779
          %803 = vmatprep.subr.bf16.mxu0 0
          %804 = vmatpush1.bf16.msra.mxu0 %v780
          %805 = vmatprep.subr.bf16.mxu0 0
          %806 = vmatpush1.bf16.msra.mxu0 0
          %807 = vmatprep.subr.bf16.mxu0 0
          %808 = vmatpush1.bf16.msra.mxu0 0
          %809 = vmatprep.subr.bf16.mxu0 0
          %810 = vmatpush1.bf16.msra.mxu0 0
          %811 = vmatprep.subr.bf16.mxu0 0
          %812 = vmatpush1.bf16.msra.mxu0 0
          %813 = vmatprep.subr.bf16.mxu0 0
          %814 = vmatpush1.bf16.msra.mxu0 0
          %815 = vmatprep.subr.bf16.mxu0 0
          %816 = vmatpush1.bf16.msra.mxu0 0
          %817 = vmatprep.subr.bf16.mxu0 0
          %818 = vmatpush1.bf16.msra.mxu0 0
          %819 = vmatprep.subr.bf16.mxu0 0
          %820 = vmatpush1.bf16.msra.mxu0 0
          %821 = vmatprep.mubr.bf16.mxu0 0
          %822 = vmatmul.mubr.bf16.gmra.mrb[0].mxu0 %v721
          %v823 = vpop.f32.mrb[0].mxu0
          %v824 = vadd.f32 0.0, %v823
          %v825 = vpop.f32.mrb[0].mxu0
          %v826 = vpop.f32.mrb[0].mxu0
          %v827 = vadd.f32 0.0, %v826
          %v828 = vpop.f32.mrb[0].mxu0
          %829 = vmatprep.mubr.bf16.mxu0 0
          %830 = vmatmul.mubr.bf16.gmra.mrb[0].mxu0 %v722
          %v831 = vpop.f32.mrb[0].mxu0
          %v832 = vadd.f32 0.0, %v831
          %v833 = vpop.f32.mrb[0].mxu0
          %v834 = vpop.f32.mrb[0].mxu0
          %v835 = vadd.f32 0.0, %v834
          %v836 = vpop.f32.mrb[0].mxu0
          %837 = vmatprep.mubr.bf16.mxu0 0
          %838 = vmatmul.mubr.bf16.gmra.mrb[0].mxu0 %v723
          %v839 = vpop.f32.mrb[0].mxu0
          %v840 = vadd.f32 0.0, %v839
          %v841 = vpop.f32.mrb[0].mxu0
          %v842 = vpop.f32.mrb[0].mxu0
          %v843 = vadd.f32 0.0, %v842
          %v844 = vpop.f32.mrb[0].mxu0
          %845 = vmatprep.mubr.bf16.mxu0 0
          %846 = vmatmul.mubr.bf16.gmra.mrb[0].mxu0 %v724
          %v847 = vpop.f32.mrb[0].mxu0
          %v848 = vadd.f32 0.0, %v847
          %v849 = vpop.f32.mrb[0].mxu0
          %v850 = vpop.f32.mrb[0].mxu0
          %v851 = vadd.f32 0.0, %v850
          %v852 = vpop.f32.mrb[0].mxu0
          %853 = vdwg.mxu0
          %v870 = vunpack.c.l.b16 %v704
          %v871 = vunpack.c.l.b16 %v705
          %v872 = vunpack.c.l.b16 %v706
          %v873 = vunpack.c.l.b16 %v707
          %v874 = vunpack.c.l.b16 %v708
          %v875 = vunpack.c.l.b16 %v709
          %v876 = vunpack.c.l.b16 %v710
          %v877 = vunpack.c.l.b16 %v711
          %v878 = vunpack.c.l.b16 %v712
          %v879 = vunpack.c.l.b16 %v713
          %v880 = vunpack.c.l.b16 %v714
          %v881 = vunpack.c.l.b16 %v715
          %v882 = vunpack.c.l.b16 %v716
          %v883 = vunpack.c.l.b16 %v717
          %v884 = vunpack.c.l.b16 %v718
          %v885 = vunpack.c.l.b16 %v719
          %v886 = vpack.c.b16 %v871, %v870
          %v887 = vpack.c.b16 %v873, %v872
          %v888 = vpack.c.b16 %v875, %v874
          %v889 = vpack.c.b16 %v877, %v876
          %v890 = vpack.c.b16 %v879, %v878
          %v891 = vpack.c.b16 %v881, %v880
          %v892 = vpack.c.b16 %v883, %v882
          %v893 = vpack.c.b16 %v885, %v884
          %902 = vmatprep.subr.bf16.mxu0 0
          %903 = vmatpush1.bf16.msra.mxu0 %v886
          %904 = vmatprep.subr.bf16.mxu0 0
          %905 = vmatpush1.bf16.msra.mxu0 %v887
          %906 = vmatprep.subr.bf16.mxu0 0
          %907 = vmatpush1.bf16.msra.mxu0 %v888
          %908 = vmatprep.subr.bf16.mxu0 0
          %909 = vmatpush1.bf16.msra.mxu0 %v889
          %910 = vmatprep.subr.bf16.mxu0 0
          %911 = vmatpush1.bf16.msra.mxu0 %v890
          %912 = vmatprep.subr.bf16.mxu0 0
          %913 = vmatpush1.bf16.msra.mxu0 %v891
          %914 = vmatprep.subr.bf16.mxu0 0
          %915 = vmatpush1.bf16.msra.mxu0 %v892
          %916 = vmatprep.subr.bf16.mxu0 0
          %917 = vmatpush1.bf16.msra.mxu0 %v893
          %918 = vmatprep.subr.bf16.mxu0 0
          %919 = vmatpush1.bf16.msra.mxu0 0
          %920 = vmatprep.subr.bf16.mxu0 0
          %921 = vmatpush1.bf16.msra.mxu0 0
          %922 = vmatprep.subr.bf16.mxu0 0
          %923 = vmatpush1.bf16.msra.mxu0 0
          %924 = vmatprep.subr.bf16.mxu0 0
          %925 = vmatpush1.bf16.msra.mxu0 0
          %926 = vmatprep.subr.bf16.mxu0 0
          %927 = vmatpush1.bf16.msra.mxu0 0
          %928 = vmatprep.subr.bf16.mxu0 0
          %929 = vmatpush1.bf16.msra.mxu0 0
          %930 = vmatprep.subr.bf16.mxu0 0
          %931 = vmatpush1.bf16.msra.mxu0 0
          %932 = vmatprep.subr.bf16.mxu0 0
          %933 = vmatpush1.bf16.msra.mxu0 0
          %934 = vmatprep.mubr.bf16.mxu0 0
          %935 = vmatmul.mubr.bf16.gmra.mrb[0].mxu0 %v700
          %v936 = vpop.f32.mrb[0].mxu0
          %v937 = vadd.f32 %v824, %v936
          %v938 = vpop.f32.mrb[0].mxu0
          %v939 = vpop.f32.mrb[0].mxu0
          %v940 = vadd.f32 %v827, %v939
          %v941 = vpop.f32.mrb[0].mxu0
          %942 = vmatprep.mubr.bf16.mxu0 0
          %943 = vmatmul.mubr.bf16.gmra.mrb[0].mxu0 %v701
          %v944 = vpop.f32.mrb[0].mxu0
          %v945 = vadd.f32 %v832, %v944
          %v946 = vpop.f32.mrb[0].mxu0
          %v947 = vpop.f32.mrb[0].mxu0
          %v948 = vadd.f32 %v835, %v947
          %v949 = vpop.f32.mrb[0].mxu0
          %950 = vmatprep.mubr.bf16.mxu0 0
          %951 = vmatmul.mubr.bf16.gmra.mrb[0].mxu0 %v702
          %v952 = vpop.f32.mrb[0].mxu0
          %v953 = vadd.f32 %v840, %v952
          %v954 = vpop.f32.mrb[0].mxu0
          %v955 = vpop.f32.mrb[0].mxu0
          %v956 = vadd.f32 %v843, %v955
          %v957 = vpop.f32.mrb[0].mxu0
          %958 = vmatprep.mubr.bf16.mxu0 0
          %959 = vmatmul.mubr.bf16.gmra.mrb[0].mxu0 %v703
          %v960 = vpop.f32.mrb[0].mxu0
          %v961 = vadd.f32 %v848, %v960
          %v962 = vpop.f32.mrb[0].mxu0
          %v963 = vpop.f32.mrb[0].mxu0
          %v964 = vadd.f32 %v851, %v963
          %v965 = vpop.f32.mrb[0].mxu0
          %966 = vdwg.mxu0
          %s967 = smul.u32 %s34, 4
          %s968 = smul.addr %s967, 8
          %s969 = scalar_lea.vmem [#allocation2], %s968
          %v970 = vld [vmem:[%s969] sm:$0xff]
          %v971 = vld [vmem:[%s969 + $0x8] sm:$0xff]
          %v972 = vld [vmem:[%s969 + $0x10] sm:$0xff]
          %v973 = vld [vmem:[%s969 + $0x18] sm:$0xff]
          %v974 = vunpack.c.l.bf16 %v970
          %v975 = vunpack.c.h.bf16 %v970
          %v976 = vunpack.c.l.bf16 %v971
          %v977 = vunpack.c.h.bf16 %v971
          %v978 = vunpack.c.l.bf16 %v972
          %v979 = vunpack.c.h.bf16 %v972
          %v980 = vunpack.c.l.bf16 %v973
          %v981 = vunpack.c.h.bf16 %v973
          %v982 = vmul.f32 %v937, %v974
          %v983 = vmul.f32 %v940, %v975
          %v984 = vmul.f32 %v945, %v976
          %v985 = vmul.f32 %v948, %v977
          %v986 = vmul.f32 %v953, %v978
          %v987 = vmul.f32 %v956, %v979
          %v988 = vmul.f32 %v961, %v980
          %v989 = vmul.f32 %v964, %v981
          %v990 = vld [vmem:[#allocation3] sm:$0xff]
          %v991 = vld [vmem:[#allocation3 + $0x8] sm:$0xff]
          %v992 = vld [vmem:[#allocation3 + $0x10] sm:$0xff]
          %v993 = vld [vmem:[#allocation3 + $0x18] sm:$0xff]
          %v994 = vld [vmem:[#allocation3 + $0x20] sm:$0xff]
          %v995 = vld [vmem:[#allocation3 + $0x28] sm:$0xff]
          %v996 = vld [vmem:[#allocation3 + $0x30] sm:$0xff]
          %v997 = vld [vmem:[#allocation3 + $0x38] sm:$0xff]
          %v998 = vld [vmem:[#allocation3 + $0x40] sm:$0xff]
          %v999 = vld [vmem:[#allocation3 + $0x48] sm:$0xff]
          %v1000 = vld [vmem:[#allocation3 + $0x50] sm:$0xff]
          %v1001 = vld [vmem:[#allocation3 + $0x58] sm:$0xff]
          %v1002 = vld [vmem:[#allocation3 + $0x60] sm:$0xff]
          %v1003 = vld [vmem:[#allocation3 + $0x68] sm:$0xff]
          %v1004 = vld [vmem:[#allocation3 + $0x70] sm:$0xff]
          %v1005 = vld [vmem:[#allocation3 + $0x78] sm:$0xff]
          %v1006 = vpack.c.bf16 %v983, %v982
          %v1007 = vpack.c.bf16 %v985, %v984
          %v1008 = vpack.c.bf16 %v987, %v986
          %v1009 = vpack.c.bf16 %v989, %v988
          %v1010 = vld [vmem:[%s324] sm:$0xff]
          %v1011 = vld [vmem:[%s324 + $0x8] sm:$0xff]
          %v1012 = vld [vmem:[%s324 + $0x10] sm:$0xff]
          %v1013 = vld [vmem:[%s324 + $0x18] sm:$0xff]
          %v1014 = vld [vmem:[%s324 + $0x20] sm:$0xff]
          %v1015 = vld [vmem:[%s324 + $0x28] sm:$0xff]
          %v1016 = vld [vmem:[%s324 + $0x30] sm:$0xff]
          %v1017 = vld [vmem:[%s324 + $0x38] sm:$0xff]
          %v1018 = vld [vmem:[%s324 + $0x40] sm:$0xff]
          %v1019 = vld [vmem:[%s324 + $0x48] sm:$0xff]
          %v1020 = vld [vmem:[%s324 + $0x50] sm:$0xff]
          %v1021 = vld [vmem:[%s324 + $0x58] sm:$0xff]
          %v1022 = vld [vmem:[%s324 + $0x60] sm:$0xff]
          %v1023 = vld [vmem:[%s324 + $0x68] sm:$0xff]
          %v1024 = vld [vmem:[%s324 + $0x70] sm:$0xff]
          %v1025 = vld [vmem:[%s324 + $0x78] sm:$0xff]
          %v1042 = vunpack.c.l.b16 %v1010
          %v1043 = vunpack.c.h.b16 %v1010
          %v1044 = vunpack.c.l.b16 %v1011
          %v1045 = vunpack.c.h.b16 %v1011
          %v1046 = vunpack.c.l.b16 %v1012
          %v1047 = vunpack.c.h.b16 %v1012
          %v1048 = vunpack.c.l.b16 %v1013
          %v1049 = vunpack.c.h.b16 %v1013
          %v1050 = vunpack.c.l.b16 %v1014
          %v1051 = vunpack.c.h.b16 %v1014
          %v1052 = vunpack.c.l.b16 %v1015
          %v1053 = vunpack.c.h.b16 %v1015
          %v1054 = vunpack.c.l.b16 %v1016
          %v1055 = vunpack.c.h.b16 %v1016
          %v1056 = vunpack.c.l.b16 %v1017
          %v1057 = vunpack.c.h.b16 %v1017
          %v1058 = vunpack.c.l.b16 %v1018
          %v1059 = vunpack.c.h.b16 %v1018
          %v1060 = vunpack.c.l.b16 %v1019
          %v1061 = vunpack.c.h.b16 %v1019
          %v1062 = vunpack.c.l.b16 %v1020
          %v1063 = vunpack.c.h.b16 %v1020
          %v1064 = vunpack.c.l.b16 %v1021
          %v1065 = vunpack.c.h.b16 %v1021
          %v1066 = vunpack.c.l.b16 %v1022
          %v1067 = vunpack.c.h.b16 %v1022
          %v1068 = vunpack.c.l.b16 %v1023
          %v1069 = vunpack.c.h.b16 %v1023
          %v1070 = vunpack.c.l.b16 %v1024
          %v1071 = vunpack.c.h.b16 %v1024
          %v1072 = vunpack.c.l.b16 %v1025
          %v1073 = vunpack.c.h.b16 %v1025
          %v1074 = vpack.c.b16 %v1044, %v1042
          %v1075 = vpack.c.b16 %v1045, %v1043
          %v1076 = vpack.c.b16 %v1048, %v1046
          %v1077 = vpack.c.b16 %v1049, %v1047
          %v1078 = vpack.c.b16 %v1052, %v1050
          %v1079 = vpack.c.b16 %v1053, %v1051
          %v1080 = vpack.c.b16 %v1056, %v1054
          %v1081 = vpack.c.b16 %v1057, %v1055
          %v1082 = vpack.c.b16 %v1060, %v1058
          %v1083 = vpack.c.b16 %v1061, %v1059
          %v1084 = vpack.c.b16 %v1064, %v1062
          %v1085 = vpack.c.b16 %v1065, %v1063
          %v1086 = vpack.c.b16 %v1068, %v1066
          %v1087 = vpack.c.b16 %v1069, %v1067
          %v1088 = vpack.c.b16 %v1072, %v1070
          %v1089 = vpack.c.b16 %v1073, %v1071
          %1106 = vmatprep.subr.bf16.mxu0 %v1075
          %1107 = vmatpush1.bf16.msra.mxu0 %v1074
          %1108 = vmatprep.subr.bf16.mxu0 %v1077
          %1109 = vmatpush1.bf16.msra.mxu0 %v1076
          %1110 = vmatprep.subr.bf16.mxu0 %v1079
          %1111 = vmatpush1.bf16.msra.mxu0 %v1078
          %1112 = vmatprep.subr.bf16.mxu0 %v1081
          %1113 = vmatpush1.bf16.msra.mxu0 %v1080
          %1114 = vmatprep.subr.bf16.mxu0 %v1083
          %1115 = vmatpush1.bf16.msra.mxu0 %v1082
          %1116 = vmatprep.subr.bf16.mxu0 %v1085
          %1117 = vmatpush1.bf16.msra.mxu0 %v1084
          %1118 = vmatprep.subr.bf16.mxu0 %v1087
          %1119 = vmatpush1.bf16.msra.mxu0 %v1086
          %1120 = vmatprep.subr.bf16.mxu0 %v1089
          %1121 = vmatpush1.bf16.msra.mxu0 %v1088
          %1122 = vmatprep.subr.bf16.mxu0 0
          %1123 = vmatpush1.bf16.msra.mxu0 0
          %1124 = vmatprep.subr.bf16.mxu0 0
          %1125 = vmatpush1.bf16.msra.mxu0 0
          %1126 = vmatprep.subr.bf16.mxu0 0
          %1127 = vmatpush1.bf16.msra.mxu0 0
          %1128 = vmatprep.subr.bf16.mxu0 0
          %1129 = vmatpush1.bf16.msra.mxu0 0
          %1130 = vmatprep.subr.bf16.mxu0 0
          %1131 = vmatpush1.bf16.msra.mxu0 0
          %1132 = vmatprep.subr.bf16.mxu0 0
          %1133 = vmatpush1.bf16.msra.mxu0 0
          %1134 = vmatprep.subr.bf16.mxu0 0
          %1135 = vmatpush1.bf16.msra.mxu0 0
          %1136 = vmatprep.subr.bf16.mxu0 0
          %1137 = vmatpush1.bf16.msra.mxu0 0
          %1138 = vmatprep.mubr.bf16.mxu0 0
          %1139 = vmatmul.mubr.bf16.gmra.mrb[0].mxu0 %v1006
          %v1140 = vpop.f32.mrb[0].mxu0
          %v1141 = vadd.f32 0.0, %v1140
          %v1142 = vpop.f32.mrb[0].mxu0
          %v1143 = vadd.f32 0.0, %v1142
          %v1144 = vpop.f32.mrb[0].mxu0
          %v1145 = vadd.f32 0.0, %v1144
          %v1146 = vpop.f32.mrb[0].mxu0
          %v1147 = vadd.f32 0.0, %v1146
          %1148 = vmatprep.mubr.bf16.mxu0 0
          %1149 = vmatmul.mubr.bf16.gmra.mrb[0].mxu0 %v1007
          %v1150 = vpop.f32.mrb[0].mxu0
          %v1151 = vadd.f32 0.0, %v1150
          %v1152 = vpop.f32.mrb[0].mxu0
          %v1153 = vadd.f32 0.0, %v1152
          %v1154 = vpop.f32.mrb[0].mxu0
          %v1155 = vadd.f32 0.0, %v1154
          %v1156 = vpop.f32.mrb[0].mxu0
          %v1157 = vadd.f32 0.0, %v1156
          %1158 = vmatprep.mubr.bf16.mxu0 0
          %1159 = vmatmul.mubr.bf16.gmra.mrb[0].mxu0 %v1008
          %v1160 = vpop.f32.mrb[0].mxu0
          %v1161 = vadd.f32 0.0, %v1160
          %v1162 = vpop.f32.mrb[0].mxu0
          %v1163 = vadd.f32 0.0, %v1162
          %v1164 = vpop.f32.mrb[0].mxu0
          %v1165 = vadd.f32 0.0, %v1164
          %v1166 = vpop.f32.mrb[0].mxu0
          %v1167 = vadd.f32 0.0, %v1166
          %1168 = vmatprep.mubr.bf16.mxu0 0
          %1169 = vmatmul.mubr.bf16.gmra.mrb[0].mxu0 %v1009
          %v1170 = vpop.f32.mrb[0].mxu0
          %v1171 = vadd.f32 0.0, %v1170
          %v1172 = vpop.f32.mrb[0].mxu0
          %v1173 = vadd.f32 0.0, %v1172
          %v1174 = vpop.f32.mrb[0].mxu0
          %v1175 = vadd.f32 0.0, %v1174
          %v1176 = vpop.f32.mrb[0].mxu0
          %v1177 = vadd.f32 0.0, %v1176
          %1178 = vdwg.mxu0
          %v1179 = vadd.f32 %v990, %v1141
          %v1180 = vadd.f32 %v991, %v1143
          %v1181 = vadd.f32 %v992, %v1145
          %v1182 = vadd.f32 %v993, %v1147
          %v1183 = vadd.f32 %v994, %v1151
          %v1184 = vadd.f32 %v995, %v1153
          %v1185 = vadd.f32 %v996, %v1155
          %v1186 = vadd.f32 %v997, %v1157
          %v1187 = vadd.f32 %v998, %v1161
          %v1188 = vadd.f32 %v999, %v1163
          %v1189 = vadd.f32 %v1000, %v1165
          %v1190 = vadd.f32 %v1001, %v1167
          %v1191 = vadd.f32 %v1002, %v1171
          %v1192 = vadd.f32 %v1003, %v1173
          %v1193 = vadd.f32 %v1004, %v1175
          %v1194 = vadd.f32 %v1005, %v1177
          %1195 = vst [vmem:[#allocation3] sm:$0xff] %v1179
          %1196 = vst [vmem:[#allocation3 + $0x8] sm:$0xff] %v1180
          %1197 = vst [vmem:[#allocation3 + $0x10] sm:$0xff] %v1181
          %1198 = vst [vmem:[#allocation3 + $0x18] sm:$0xff] %v1182
          %1199 = vst [vmem:[#allocation3 + $0x20] sm:$0xff] %v1183
          %1200 = vst [vmem:[#allocation3 + $0x28] sm:$0xff] %v1184
          %1201 = vst [vmem:[#allocation3 + $0x30] sm:$0xff] %v1185
          %1202 = vst [vmem:[#allocation3 + $0x38] sm:$0xff] %v1186
          %1203 = vst [vmem:[#allocation3 + $0x40] sm:$0xff] %v1187
          %1204 = vst [vmem:[#allocation3 + $0x48] sm:$0xff] %v1188
          %1205 = vst [vmem:[#allocation3 + $0x50] sm:$0xff] %v1189
          %1206 = vst [vmem:[#allocation3 + $0x58] sm:$0xff] %v1190
          %1207 = vst [vmem:[#allocation3 + $0x60] sm:$0xff] %v1191
          %1208 = vst [vmem:[#allocation3 + $0x68] sm:$0xff] %v1192
          %1209 = vst [vmem:[#allocation3 + $0x70] sm:$0xff] %v1193
          %1210 = vst [vmem:[#allocation3 + $0x78] sm:$0xff] %v1194
          %p1211 = scmp.eq.s32.totalorder %s34, 1
          // Predicated region
          $region65: #{tpu_custom_call.1} parent=59 // pred_check
            %p1212 = pneg %p1211
          $region66: #{tpu_custom_call.1} parent=59 // pred_check_branch
            %1214 = sbr.rel (%p1212) target = $region68
          $region67: #{tpu_custom_call.1} parent=59 // pred_region
            %v1215 = vld [vmem:[#allocation3] sm:$0xff]
            %v1216 = vld [vmem:[#allocation3 + $0x8] sm:$0xff]
            %v1217 = vld [vmem:[#allocation3 + $0x10] sm:$0xff]
            %v1218 = vld [vmem:[#allocation3 + $0x18] sm:$0xff]
            %v1219 = vld [vmem:[#allocation3 + $0x20] sm:$0xff]
            %v1220 = vld [vmem:[#allocation3 + $0x28] sm:$0xff]
            %v1221 = vld [vmem:[#allocation3 + $0x30] sm:$0xff]
            %v1222 = vld [vmem:[#allocation3 + $0x38] sm:$0xff]
            %v1223 = vld [vmem:[#allocation3 + $0x40] sm:$0xff]
            %v1224 = vld [vmem:[#allocation3 + $0x48] sm:$0xff]
            %v1225 = vld [vmem:[#allocation3 + $0x50] sm:$0xff]
            %v1226 = vld [vmem:[#allocation3 + $0x58] sm:$0xff]
            %v1227 = vld [vmem:[#allocation3 + $0x60] sm:$0xff]
            %v1228 = vld [vmem:[#allocation3 + $0x68] sm:$0xff]
            %v1229 = vld [vmem:[#allocation3 + $0x70] sm:$0xff]
            %v1230 = vld [vmem:[#allocation3 + $0x78] sm:$0xff]
            %1231 = vst [vmem:[%s363] sm:$0xff] %v1215
            %1232 = vst [vmem:[%s363 + $0x8] sm:$0xff] %v1216
            %1233 = vst [vmem:[%s363 + $0x10] sm:$0xff] %v1217
            %1234 = vst [vmem:[%s363 + $0x18] sm:$0xff] %v1218
            %1235 = vst [vmem:[%s363 + $0x20] sm:$0xff] %v1219
            %1236 = vst [vmem:[%s363 + $0x28] sm:$0xff] %v1220
            %1237 = vst [vmem:[%s363 + $0x30] sm:$0xff] %v1221
            %1238 = vst [vmem:[%s363 + $0x38] sm:$0xff] %v1222
            %1239 = vst [vmem:[%s363 + $0x40] sm:$0xff] %v1223
            %1240 = vst [vmem:[%s363 + $0x48] sm:$0xff] %v1224
            %1241 = vst [vmem:[%s363 + $0x50] sm:$0xff] %v1225
            %1242 = vst [vmem:[%s363 + $0x58] sm:$0xff] %v1226
            %1243 = vst [vmem:[%s363 + $0x60] sm:$0xff] %v1227
            %1244 = vst [vmem:[%s363 + $0x68] sm:$0xff] %v1228
            %1245 = vst [vmem:[%s363 + $0x70] sm:$0xff] %v1229
            %1246 = vst [vmem:[%s363 + $0x78] sm:$0xff] %v1230
          $region68: #{tpu_custom_call.1} parent=59 // pred_fallthru
            _
        $region60: #{tpu_custom_call.1} parent=35 // pred_fallthru
          _
        %s1247 = sand.u32 %s166, 1
        %s1248 = scalar_lea.sflag [#allocation6], %s1247
        %s1249 = sand.u32 %s166, 1
        %s1250 = smul.addr %s1249, 128
        %s1251 = scalar_lea.vmem [#allocation12], %s1250
        // Predicated region
        $region69: #{tpu_custom_call.1} parent=35 // pred_check
          %p1252 = pneg %p176
        $region70: #{tpu_custom_call.1} parent=35 // pred_check_branch
          %1254 = sbr.rel (%p1252) target = $region72
        $region71: #{tpu_custom_call.1} parent=35 // pred_region
          %s1255 = smul.u32 8, %s32
          %s1257 = ssub.s32 2048, 2048
          %1258 = vsyncadd %s1248, %s1257
          %s1259 = smul.addr %s1255, 2
          %s1260 = smul.addr %s1259, 128
          %s1261 = scalar_lea.hbm %s4, %s1260
          %s1262 = sshll.u32 %s1251, 4
          %s1263 = int_to_ptr.vmem [resolvable:$true] %s1262
          %1268 = dma.vmem_to_hbm [thread:$0]  %s1263, 2048, %s1261, %s1248, 256, 256, 16
        $region72: #{tpu_custom_call.1} parent=35 // pred_fallthru
          _
      $region36: #{tpu_custom_call.1} parent=5 // pred_fallthru
        _
      %p1269 = scmp.le.s32.totalorder 2, %s22
      // Predicated region
      $region73: #{tpu_custom_call.1} parent=5 // pred_check
        %p1270 = pneg %p1269
      $region74: #{tpu_custom_call.1} parent=5 // pred_check_branch
        %1272 = sbr.rel (%p1270) target = $region76
      $region75: #{tpu_custom_call.1} parent=5 // pred_region
        %s1273 = ssub.s32 %s22, 2
        // Predicated region
        $region77: #{tpu_custom_call.1} parent=75 // pred_check
          %p1274 = pneg %p182
        $region78: #{tpu_custom_call.1} parent=75 // pred_check_branch
          %1276 = sbr.rel (%p1274) target = $region80
        $region79: #{tpu_custom_call.1} parent=75 // pred_region
          %s1277 = sand.u32 %s167, 1
          %s1278 = scalar_lea.sflag [#allocation6], %s1277
          %s1279 = sand.u32 %s167, 1
          %s1280 = smul.addr %s1279, 128
          %s1281 = scalar_lea.vmem [#allocation12], %s1280
          %1282 = dma.done %s1278, 2048
        $region80: #{tpu_custom_call.1} parent=75 // pred_fallthru
          _
      $region76: #{tpu_custom_call.1} parent=5 // pred_fallthru
        _
    $region6: #{tpu_custom_call.1} parent=1 // loop_footer
      %s26 = sadd.s32 1, %s22
    $region7: #{tpu_custom_call.1} parent=1 // loop_footer_branch
      %21 = sbr.rel target = $region3
    $region8: #{tpu_custom_call.1} parent=1 // loop_exit
      _
    %1283 = vsyncpa [#allocation5], 1
    %s1284 = scalar_lea.sflag [#allocation5], 1
    %1285 = vsyncpa %s1284, 1
    %1286 = vsyncpa [#allocation8], 1
    %s1287 = scalar_lea.sflag [#allocation8], 1
    %1288 = vsyncpa %s1287, 1
    %1289 = vsyncpa [#allocation11], 1
    %s1290 = scalar_lea.sflag [#allocation11], 1
    %1291 = vsyncpa %s1290, 1
    %1292 = vsyncpa [#allocation6], 1
    %s1293 = scalar_lea.sflag [#allocation6], 1
    %1294 = vsyncpa %s1293, 1

</llo_original>
